<compile_context>
chip_gen: v7x
topology: tpu7x:2x2x1
jax: 0.10.0
libtpu: 0.0.40
codegen_flags: <defaults>
</compile_context>

<pallas_src>
import functools

import jax
import jax.numpy as jnp
from jax.experimental import pallas as pl
from jax.experimental.pallas import tpu as pltpu


def _focal_ce_partial_kernel(pred_ref, target_ref, out_ref, acc_ref, *,
                             tile_n: int, tiles_per_split: int,
                             num_row_blocks: int, n_total: int):
    """Accumulates the sum of per-row cross entropy for this core split.

    pred_ref:   (tile_n, C)      logits block (any float dtype) in VMEM
    target_ref: (padded_n, 1)    full int32 label array, resident in VMEM
    out_ref:    (8, 128)         lane-dense per-split partial-sum block
    acc_ref:    (tile_n, 1)      f32 per-row running sum (persists across tiles)
    """
    ci = pl.program_id(0)   # core split index   (CORE_PARALLEL on v7x)
    ti = pl.program_id(1)   # tile index         ("arbitrary" reduction axis)

    @pl.when(ti == 0)
    def _init():
        acc_ref[...] = jnp.zeros_like(acc_ref)

    block_idx = ci * tiles_per_split + ti
    clamped_idx = jnp.minimum(block_idx, num_row_blocks - 1)

    logits = pred_ref[...].astype(jnp.float32)                              # (tile_n, C)

    # Slice the matching label rows out of the resident (padded) label array.
    row_start = clamped_idx * tile_n
    if tile_n % 8 == 0:
        row_start = pl.multiple_of(row_start, 8)
    tgt = target_ref[pl.ds(row_start, tile_n), :]                           # (tile_n, 1)

    # Numerically-stable per-row logsumexp (log-softmax denominator).
    row_max = jnp.max(logits, axis=-1, keepdims=True)                       # (tile_n, 1)
    lse = row_max + jnp.log(jnp.sum(jnp.exp(logits - row_max),
                                    axis=-1, keepdims=True))                # (tile_n, 1)

    # Gather the logit at the target class: (1, C) iota broadcast-compared
    # against (tile_n, 1) labels, then a where-select + lane reduce.
    col_ids = jax.lax.broadcasted_iota(jnp.int32, (1, logits.shape[1]), 1)  # (1, C)
    picked = jnp.sum(jnp.where(col_ids == tgt, logits, 0.0),
                     axis=-1, keepdims=True)                                # (tile_n, 1)

    per_row_ce = lse - picked                                               # (tile_n, 1)

    # Mask rows past the true batch size: tail-tile padding and the clamped
    # duplicate tiles read by core splits beyond the last real block (the
    # UNclamped global row index covers both cases).
    row_in_tile = jax.lax.broadcasted_iota(jnp.int32, (tile_n, 1), 0)
    global_row = block_idx * tile_n + row_in_tile
    per_row_ce = jnp.where(global_row < n_total, per_row_ce, 0.0)

    # Pure elementwise accumulate in the hot loop; reductions happen once below.
    acc_ref[...] += per_row_ce

    @pl.when(ti == pl.num_programs(1) - 1)
    def _finalize():
        total = jnp.sum(acc_ref[...], keepdims=True)                        # (1, 1)
        out_ref[...] = jnp.broadcast_to(total, out_ref.shape)


def _tpu_budget():
    """Best-effort hardware probe: (vmem_capacity_bytes, tensorcores_per_chip)."""
    vmem = None
    cores = 1
    try:
        info = pltpu.get_tpu_info()
        for attr in ("vmem_capacity_bytes", "vmem_bytes", "vmem_size_bytes"):
            v = getattr(info, attr, None)
            if isinstance(v, int) and not isinstance(v, bool) and v > 0:
                vmem = int(v)
                break
        for attr in ("num_cores", "cores_per_chip", "num_tensorcores",
                     "tensorcores_per_chip", "tensorcore_count"):
            v = getattr(info, attr, None)
            if isinstance(v, int) and not isinstance(v, bool) and v > 0:
                cores = int(v)
                break
    except Exception:
        pass
    if vmem is None:
        vmem = 64 * 1024 * 1024          # conservative: v7x-class VMEM budget
    return vmem, max(1, min(2, cores))   # no chip has more than 2 TensorCores


def _choose_tile_n(n: int, c: int, itemsize: int, target_block_bytes: int,
                   max_rows: int = 8192) -> int:
    """Row count giving ~target-sized input blocks; multiple of 16; full batch if it fits."""
    rows = (target_block_bytes // max(1, c * itemsize)) // 16 * 16
    rows = max(16, min(max_rows, rows))
    if rows >= n:
        return n                          # single full-height block: always legal
    return rows


def focal_loss(pred: jax.Array, target: jax.Array, *, gamma: float = 0.0,
               eps: float = 1e-07, tile_n: int | None = None,
               num_splits: int | None = None) -> jax.Array:
    """Pallas FocalLoss forward. pred: [N, C] float, target: [N] int. Returns scalar.

    `eps` is accepted for parity with the PyTorch module but (as there) unused.
    """
    del eps  # unused in the reference forward()
    n, c = pred.shape

    vmem_bytes, n_cores = _tpu_budget()
    if vmem_bytes >= 100 * 1024 * 1024:       # v5e / v6e: 128 MiB physical VMEM
        target_block_bytes = 6 * 1024 * 1024
        vmem_limit = 96 * 1024 * 1024
    else:                                     # v7x (64 MiB) or unknown chip
        target_block_bytes = 3 * 1024 * 1024
        vmem_limit = 48 * 1024 * 1024

    if tile_n is None:
        tile_n = _choose_tile_n(n, c, pred.dtype.itemsize, target_block_bytes)

    num_row_blocks = pl.cdiv(n, tile_n)
    if num_splits is None:
        num_splits = n_cores                  # 1 on v5e/v6e, 2 on v7x
    num_splits = max(1, min(num_splits, num_row_blocks))   # never duplicate work
    tiles_per_split = pl.cdiv(num_row_blocks, num_splits)

    # Labels stay fully resident in VMEM; pad to the block grid so the in-kernel
    # pl.ds slice never reads past the allocation (padded rows are masked).
    padded_rows = num_row_blocks * tile_n
    target_2d = target.astype(jnp.int32).reshape(n, 1)
    if padded_rows > n:
        target_2d = jnp.pad(target_2d, ((0, padded_rows - n), (0, 0)))

    def _logits_block(ci, ti):
        # Clamp so the DMA never starts past the array; duplicate rows read by
        # the clamped index are masked out inside the kernel.
        return (jnp.minimum(ci * tiles_per_split + ti, num_row_blocks - 1), 0)

    kernel = functools.partial(
        _focal_ce_partial_kernel,
        tile_n=tile_n, tiles_per_split=tiles_per_split,
        num_row_blocks=num_row_blocks, n_total=n)

    cost = pl.CostEstimate(
        flops=6 * n * c,
        transcendentals=n * (c + 1),
        bytes_accessed=(n * c * pred.dtype.itemsize + padded_rows * 4
                        + num_splits * 8 * 128 * 4),
    )

    if num_splits > 1:
        # Real 2-TensorCore sharding of the batch reduction (v7x).
        dim_sem = (pltpu.CORE_PARALLEL, pltpu.ARBITRARY)
    else:
        dim_sem = (pltpu.ARBITRARY, pltpu.ARBITRARY)

    partials = pl.pallas_call(
        kernel,
        out_shape=jax.ShapeDtypeStruct((num_splits * 8, 128), jnp.float32),
        grid_spec=pltpu.PrefetchScalarGridSpec(
            num_scalar_prefetch=0,
            grid=(num_splits, tiles_per_split),
            in_specs=[
                # Streamed logits tiles (double-buffered by the pipeline).
                # TODO(synk): add pipeline_mode=pl.Buffered(3) on v7x if the
                # xprof trace still shows exposed per-step DMA after retuning.
                pl.BlockSpec((tile_n, c), _logits_block),
                # Full (padded) label array, resident across the whole grid.
                pl.BlockSpec((padded_rows, 1), lambda ci, ti: (0, 0)),
            ],
            out_specs=pl.BlockSpec((8, 128), lambda ci, ti: (ci, 0)),
            scratch_shapes=[pltpu.VMEM((tile_n, 1), jnp.float32)],
        ),
        compiler_params=pltpu.CompilerParams(
            dimension_semantics=dim_sem,
            vmem_limit_bytes=vmem_limit,
        ),
        cost_estimate=cost,
    )(pred, target_2d)

    # O(1) focal epilogue on the per-core partial sums (plain JAX, negligible).
    ce_sum = jnp.sum(partials[::8, 0])
    logp = ce_sum / jnp.float32(n)            # == nn.CrossEntropyLoss() mean CE
    p = jnp.exp(-logp)
    loss = (1.0 - p) ** jnp.float32(gamma) * logp
    return loss


if __name__ == "__main__":
    key = jax.random.PRNGKey(0)
    k_pred, k_tgt = jax.random.split(key)

    # Small shapes; N deliberately NOT a multiple of tile_n to exercise masking.
    N, C = 20, 128
    pred = jax.random.normal(k_pred, (N, C), dtype=jnp.float32)
    target = jax.random.randint(k_tgt, (N,), 0, C, dtype=jnp.int32)

    gamma = 2.0
    loss = focal_loss(pred, target, gamma=gamma, tile_n=8)   # multi-tile path
    jax.block_until_ready(loss)

    # Pure-JAX reference of the same (module) math.
    logp_ref = jnp.mean(
        jax.nn.logsumexp(pred, axis=-1) - pred[jnp.arange(N), target])
    loss_ref = (1.0 - jnp.exp(-logp_ref)) ** gamma * logp_ref
    assert jnp.allclose(loss, loss_ref, rtol=1e-5, atol=1e-6), (loss, loss_ref)

    # gamma = 0 (module default) reduces to plain mean cross entropy;
    # uses the automatic tile chooser (single full-height block here) and the
    # fixed num_splits clamp (no duplicate DMA of the single block).
    loss0 = focal_loss(pred, target, gamma=0.0)
    jax.block_until_ready(loss0)
    assert jnp.allclose(loss0, logp_ref, rtol=1e-5, atol=1e-6), (loss0, logp_ref)

    print("KERNEL_OK")
</pallas_src>

<mosaic_0001>
module attributes {stable_mosaic.version = 11 : i64} {
  func.func @_focal_ce_partial_kernel(%arg0: i32, %arg1: i32, %arg2: memref<8x128xf32, #tpu.memory_space<vmem>>, %arg3: memref<24x1xi32, #tpu.memory_space<vmem>>, %arg4: memref<8x128xf32, #tpu.memory_space<vmem>>, %arg5: memref<8x1xf32, #tpu.memory_space<vmem>>) attributes {dimension_semantics = [#tpu.dimension_semantics<arbitrary>, #tpu.dimension_semantics<arbitrary>], iteration_bounds = array<i64: 1, 3>, scalar_prefetch = 0 : i64, scratch_operands = 1 : i64, tpu.core_type = #tpu.core_type<tc>, window_params = [{transform_indices = @transform_0, window_bounds = array<i64: 8, 128>}, {pipeline_mode = #tpu.pipeline_mode<synchronous>, transform_indices = @transform_1, window_bounds = array<i64: 24, 1>}, {transform_indices = @transform_2, window_bounds = array<i64: 8, 128>}]} {
    %c0_i32 = arith.constant 0 : i32
    %0 = arith.cmpi eq, %arg1, %c0_i32 : i32
    %1 = arith.extui %0 : i1 to i32
    %c0_i32_0 = arith.constant 0 : i32
    %2 = arith.cmpi ne, %1, %c0_i32_0 : i32
    scf.if %2 {
      %cst_14 = arith.constant 0.000000e+00 : f32
      %43 = vector.broadcast %cst_14 : f32 to vector<8x1xf32>
      %c0_15 = arith.constant 0 : index
      %c0_16 = arith.constant 0 : index
      %44 = vector.load %arg5[%c0_15, %c0_16] : memref<8x1xf32, #tpu.memory_space<vmem>>, vector<8x1xf32>
      tpu.vector_store %arg5[%c0_15, %c0_16], %43 {strides = array<i32>} : memref<8x1xf32, #tpu.memory_space<vmem>>, vector<8x1xf32>,
    } else {
    }
    %c3_i32 = arith.constant 3 : i32
    %3 = arith.muli %arg0, %c3_i32 : i32
    %4 = arith.addi %3, %arg1 : i32
    %c2_i32 = arith.constant 2 : i32
    %5 = arith.minsi %4, %c2_i32 : i32
    %c0 = arith.constant 0 : index
    %c0_1 = arith.constant 0 : index
    %6 = vector.load %arg2[%c0, %c0_1] : memref<8x128xf32, #tpu.memory_space<vmem>>, vector<8x128xf32>
    %c8_i32 = arith.constant 8 : i32
    %7 = arith.muli %5, %c8_i32 : i32
    %8 = tpu.assume_multiple %7, 8 : i32
    %9 = arith.index_cast %8 : i32 to index
    %c0_2 = arith.constant 0 : index
    %10 = vector.load %arg3[%9, %c0_2] : memref<24x1xi32, #tpu.memory_space<vmem>>, vector<8x1xi32>
    %cst = arith.constant dense<0xFF800000> : vector<8xf32>
    %11 = vector.multi_reduction <maximumf>, %6, %cst [1] : vector<8x128xf32> to vector<8xf32>
    %12 = vector.shape_cast %11 : vector<8xf32> to vector<8x1xf32>
    %13 = vector.broadcast %12 : vector<8x1xf32> to vector<8x128xf32>
    %14 = arith.subf %6, %13 : vector<8x128xf32>
    %15 = math.exp %14 : vector<8x128xf32>
    %cst_3 = arith.constant dense<0.000000e+00> : vector<8xf32>
    %16 = vector.multi_reduction <add>, %15, %cst_3 [1] : vector<8x128xf32> to vector<8xf32>
    %17 = vector.shape_cast %16 : vector<8xf32> to vector<8x1xf32>
    %18 = math.log %17 : vector<8x1xf32>
    %19 = arith.addf %12, %18 : vector<8x1xf32>
    %20 = tpu.iota {dimensions = array<i32: 1>} : vector<1x128xi32>
    %21 = vector.broadcast %20 : vector<1x128xi32> to vector<8x128xi32>
    %22 = vector.broadcast %10 : vector<8x1xi32> to vector<8x128xi32>
    %23 = arith.cmpi eq, %21, %22 : vector<8x128xi32>
    %cst_4 = arith.constant 0.000000e+00 : f32
    %24 = vector.broadcast %cst_4 : f32 to vector<8x128xf32>
    %25 = arith.select %23, %6, %24 : vector<8x128xi1>, vector<8x128xf32>
    %cst_5 = arith.constant dense<0.000000e+00> : vector<8xf32>
    %26 = vector.multi_reduction <add>, %25, %cst_5 [1] : vector<8x128xf32> to vector<8xf32>
    %27 = vector.shape_cast %26 : vector<8xf32> to vector<8x1xf32>
    %28 = arith.subf %19, %27 : vector<8x1xf32>
    %29 = tpu.iota {dimensions = array<i32: 0>} : vector<8x1xi32>
    %c8_i32_6 = arith.constant 8 : i32
    %30 = arith.muli %4, %c8_i32_6 : i32
    %31 = vector.broadcast %30 : i32 to vector<8x1xi32>
    %32 = arith.addi %31, %29 : vector<8x1xi32>
    %c20_i32 = arith.constant 20 : i32
    %33 = vector.broadcast %c20_i32 : i32 to vector<8x1xi32>
    %34 = arith.cmpi slt, %32, %33 : vector<8x1xi32>
    %cst_7 = arith.constant 0.000000e+00 : f32
    %35 = vector.broadcast %cst_7 : f32 to vector<8x1xf32>
    %36 = arith.select %34, %28, %35 : vector<8x1xi1>, vector<8x1xf32>
    %c0_8 = arith.constant 0 : index
    %c0_9 = arith.constant 0 : index
    %37 = vector.load %arg5[%c0_8, %c0_9] : memref<8x1xf32, #tpu.memory_space<vmem>>, vector<8x1xf32>
    %38 = arith.addf %37, %36 : vector<8x1xf32>
    %c0_10 = arith.constant 0 : index
    %c0_11 = arith.constant 0 : index
    %39 = vector.load %arg5[%c0_10, %c0_11] : memref<8x1xf32, #tpu.memory_space<vmem>>, vector<8x1xf32>
    tpu.vector_store %arg5[%c0_10, %c0_11], %38 {strides = array<i32>} : memref<8x1xf32, #tpu.memory_space<vmem>>, vector<8x1xf32>,
    %c2_i32_12 = arith.constant 2 : i32
    %40 = arith.cmpi eq, %arg1, %c2_i32_12 : i32
    %41 = arith.extui %40 : i1 to i32
    %c0_i32_13 = arith.constant 0 : i32
    %42 = arith.cmpi ne, %41, %c0_i32_13 : i32
    scf.if %42 {
      %c0_14 = arith.constant 0 : index
      %c0_15 = arith.constant 0 : index
      %43 = vector.load %arg5[%c0_14, %c0_15] : memref<8x1xf32, #tpu.memory_space<vmem>>, vector<8x1xf32>
      %44 = vector.shape_cast %43 : vector<8x1xf32> to vector<1x8x1xf32>
      %cst_16 = arith.constant dense<0.000000e+00> : vector<1xf32>
      %45 = vector.multi_reduction <add>, %44, %cst_16 [1, 2] : vector<1x8x1xf32> to vector<1xf32>
      %46 = vector.shape_cast %45 : vector<1xf32> to vector<1x1x1xf32>
      %47 = vector.extract %46[0, 0, 0] : f32 from vector<1x1x1xf32>
      %48 = vector.broadcast %47 : f32 to vector<1x1xf32>
      %49 = vector.shape_cast %48 : vector<1x1xf32> to vector<1x1xf32>
      %50 = vector.broadcast %49 : vector<1x1xf32> to vector<8x128xf32>
      %c0_17 = arith.constant 0 : index
      %c0_18 = arith.constant 0 : index
      %51 = vector.load %arg4[%c0_17, %c0_18] : memref<8x128xf32, #tpu.memory_space<vmem>>, vector<8x128xf32>
      tpu.vector_store %arg4[%c0_17, %c0_18], %50 {strides = array<i32>} : memref<8x128xf32, #tpu.memory_space<vmem>>, vector<8x128xf32>,
    } else {
    }
    return
  }
  func.func @transform_0(%arg0: i32, %arg1: i32) -> (i32, i32) {
    %c3_i32 = arith.constant 3 : i32
    %0 = arith.muli %arg0, %c3_i32 : i32
    %1 = arith.addi %0, %arg1 : i32
    %c2_i32 = arith.constant 2 : i32
    %2 = arith.minsi %1, %c2_i32 : i32
    %c0_i32 = arith.constant 0 : i32
    %c0_i32_0 = arith.constant 0 : i32
    return %2, %c0_i32 : i32, i32
  }
  func.func @transform_1(%arg0: i32, %arg1: i32) -> (i32, i32) {
    %c0_i32 = arith.constant 0 : i32
    %c0_i32_0 = arith.constant 0 : i32
    %c0_i32_1 = arith.constant 0 : i32
    return %c0_i32, %c0_i32_0 : i32, i32
  }
  func.func @transform_2(%arg0: i32, %arg1: i32) -> (i32, i32) {
    %c0_i32 = arith.constant 0 : i32
    %c0_i32_0 = arith.constant 0 : i32
    return %arg0, %c0_i32 : i32, i32
  }
}

</mosaic_0001>

<llo_original>
// kernel: tpu_custom_call.1
$region0: #{tpu_custom_call.1}
  #allocation0 [shape = 'u32[]', space=smem, size = 0x4, offset = 0x4, fixed_abs, tag = 'smem constant byte address 0x4 - core index']
  #allocation1 [shape = 'u32[144,128]{1,0:T(1,128)}', space=vmem, size = 0x12000, scoped, tag = 'internal scratch']
  #allocation2 [shape = 'f32[8,1]{1,0:T(8,128)}', space=vmem, size = 0x1000, scoped, tag = 'scratch operand']
  %s0 = inlined_call_operand.vmem [shape: f32[20,128], index: 0, kind: input, shape index: {}]
  %s1 = inlined_call_operand.vmem [shape: s32[24,1], index: 1, kind: input, shape index: {}]
  %s2 = inlined_call_operand.hbm [shape: f32[8,128], index: 2, kind: output, shape index: {}]
  %s3 = sld [smem:[#allocation0]]
  $region49: #{tpu_custom_call.1} parent=0
    _
  %s5 = ssub.s32 1, %s3
  %s6 = scalar_select 0, %s5, %s3
  $region1: #{tpu_custom_call.1} parent=0
    #allocation3 [shape = 'u8[4096]{0}', space=vmem, size = 0x1000, scoped, tag = 'output window, operand 0, single buffered']
    #allocation4 [shape = 's32[2]{0}', space=sflag, size = 0x8, scoped, tag = 'scoped memory for tpu_custom_call.1']
    %7 = vsyncpa [#allocation4], 0
    loop: start=0, step=1, limit=5
    $region2: #{tpu_custom_call.1} parent=1 // loop_pre_header
      _
    $region3: #{tpu_custom_call.1} parent=1 // loop_header
      %s9 = sphi 0, %s13
      %p10 = scmp.ge.s32.totalorder %s9, 5
      %s16 = sphi 0, %s28
      %s17 = sphi 0, %s24
      %s18 = sphi 0, %s16
      %s19 = sphi 0, %s17
      %s20 = sphi 0, %s18
      %s21 = sphi 0, %s19
      %s39 = sphi 0, %s41
      %s42 = sphi 0, %s39
      %s43 = sphi 0, %s42
      %s59 = sphi 0, %s43
      %s63 = sphi 0, %s63
      %s65 = sphi 0, %s63
      %s66 = sphi 0, %s65
      %s80 = sphi 0, %s66
      %s86 = sphi 0, %s88
      %s89 = sphi 0, %s86
      %s90 = sphi 0, %s89
      %s106 = sphi 0, %s90
    $region4: #{tpu_custom_call.1} parent=1 // loop_header_branch
      %12 = sbr.rel (%p10) target = $region8
    $region5: #{tpu_custom_call.1} parent=1 // loop_body
      %s14 = ssub.s32 %s9, 1
      %s15 = ssub.s32 %s9, 2
      %s22 = sadd.s32 1, %s17
      %p23 = scmp.ge.s32.totalorder %s22, 3
      %s24 = scalar_select %p23, 0, %s22
      %s25 = sadd.s32 1, %s16
      %s26 = scalar_select %p23, %s25, %s16
      %p27 = scmp.ge.s32.totalorder %s26, 1
      %s28 = scalar_select %p27, 0, %s26
      %s29 = smul.u32 %s16, 3
      %s30 = sadd.s32 %s29, %s17
      %p31 = scmp.lt.s32.totalorder %s30, 2
      %s32 = scalar_select %p31, %s30, 2
      %s33 = smul.u32 %s28, 3
      %s34 = sadd.s32 %s33, %s24
      %p35 = scmp.lt.s32.totalorder %s34, 2
      %s36 = scalar_select %p35, %s34, 2
      %s37 = ssub.s32 %s32, %s36
      %p38 = scmp.eq.s32.totalorder %s37, 0
      %s40 = sadd.s32 %s39, 1
      %s41 = scalar_select %p38, %s39, %s40
      %p44 = pneg %p38
      %p45 = scmp.eq.s32.totalorder %s9, 2
      %p46 = por %p44, %p45
      %p47 = scmp.ne.s32.totalorder %s39, %s42
      %p48 = scmp.eq.s32.totalorder %s9, 0
      %p49 = por %p47, %p48
      %p50 = scmp.ne.s32.totalorder %s39, %s42
      %p51 = scmp.eq.s32.totalorder %s14, 2
      %p52 = por %p50, %p51
      %p53 = scmp.ne.s32.totalorder %s42, %s43
      %p54 = scmp.eq.s32.totalorder %s14, 0
      %p55 = por %p53, %p54
      %p56 = scmp.ne.s32.totalorder %s42, %s43
      %p57 = scmp.eq.s32.totalorder %s15, 2
      %p58 = por %p56, %p57
      %p60 = scmp.ne.s32.totalorder %s43, %s59
      %p61 = scmp.eq.s32.totalorder %s15, 0
      %p62 = por %p60, %p61
      %s64 = sadd.s32 %s63, 1
      %p67 = scmp.eq.s32.totalorder %s9, 2
      %p68 = scmp.ne.s32.totalorder %s63, %s65
      %p69 = scmp.eq.s32.totalorder %s9, 0
      %p70 = por %p68, %p69
      %p71 = scmp.ne.s32.totalorder %s63, %s65
      %p72 = scmp.eq.s32.totalorder %s14, 2
      %p73 = por %p71, %p72
      %p74 = scmp.ne.s32.totalorder %s65, %s66
      %p75 = scmp.eq.s32.totalorder %s14, 0
      %p76 = por %p74, %p75
      %p77 = scmp.ne.s32.totalorder %s65, %s66
      %p78 = scmp.eq.s32.totalorder %s15, 2
      %p79 = por %p77, %p78
      %p81 = scmp.ne.s32.totalorder %s66, %s80
      %p82 = scmp.eq.s32.totalorder %s15, 0
      %p83 = por %p81, %p82
      %s84 = ssub.s32 %s16, %s28
      %p85 = scmp.eq.s32.totalorder %s84, 0
      %s87 = sadd.s32 %s86, 1
      %s88 = scalar_select %p85, %s86, %s87
      %p91 = pneg %p85
      %p92 = scmp.eq.s32.totalorder %s9, 2
      %p93 = por %p91, %p92
      %p94 = scmp.ne.s32.totalorder %s86, %s89
      %p95 = scmp.eq.s32.totalorder %s9, 0
      %p96 = por %p94, %p95
      %p97 = scmp.ne.s32.totalorder %s86, %s89
      %p98 = scmp.eq.s32.totalorder %s14, 2
      %p99 = por %p97, %p98
      %p100 = scmp.ne.s32.totalorder %s89, %s90
      %p101 = scmp.eq.s32.totalorder %s14, 0
      %p102 = por %p100, %p101
      %p103 = scmp.ne.s32.totalorder %s89, %s90
      %p104 = scmp.eq.s32.totalorder %s15, 2
      %p105 = por %p103, %p104
      %p107 = scmp.ne.s32.totalorder %s90, %s106
      %p108 = scmp.eq.s32.totalorder %s15, 0
      %p109 = por %p107, %p108
      %p110 = scmp.le.s32.totalorder 1, %s9
      %p111 = scmp.lt.s32.totalorder %s9, 4
      %p112 = pnand %p110, %p111
      %p113 = pneg %p112
      // Predicated region
      $region9: #{tpu_custom_call.1} parent=5 // pred_check
        _
      $region10: #{tpu_custom_call.1} parent=5 // pred_check_branch
        %115 = sbr.rel (%p112) target = $region12
      $region11: #{tpu_custom_call.1} parent=5 // pred_region
        %s116 = ssub.s32 %s9, 1
        // Predicated region
        $region13: #{tpu_custom_call.1} parent=11 // pred_check
          %p117 = pneg %p76
        $region14: #{tpu_custom_call.1} parent=11 // pred_check_branch
          %119 = sbr.rel (%p117) target = $region16
        $region15: #{tpu_custom_call.1} parent=11 // pred_region
          _
        $region16: #{tpu_custom_call.1} parent=11 // pred_fallthru
          _
      $region12: #{tpu_custom_call.1} parent=5 // pred_fallthru
        _
      %p120 = scmp.lt.s32.totalorder %s9, 3
      // Predicated region
      $region17: #{tpu_custom_call.1} parent=5 // pred_check
        %p121 = pneg %p120
      $region18: #{tpu_custom_call.1} parent=5 // pred_check_branch
        %123 = sbr.rel (%p121) target = $region20
      $region19: #{tpu_custom_call.1} parent=5 // pred_region
        // Predicated region
        $region21: #{tpu_custom_call.1} parent=19 // pred_check
          %p124 = pneg %p49
        $region22: #{tpu_custom_call.1} parent=19 // pred_check_branch
          %126 = sbr.rel (%p124) target = $region24
        $region23: #{tpu_custom_call.1} parent=19 // pred_region
          %s127 = smul.u32 %s16, 3
          %s128 = sadd.s32 %s127, %s17
          %p129 = scmp.lt.s32.totalorder %s128, 2
          %s130 = scalar_select %p129, %s128, 2
          %p131 = scmp.lt.s32.totalorder %s130, 2
          %s132 = scalar_select %p131, %s130, 2
          %s133 = smul.addr %s132, 8
          %s134 = scalar_lea.vmem %s0, %s133
          %s135 = smul.u32 %s16, 3
          %s136 = sadd.s32 %s135, %s17
          %p137 = scmp.lt.s32.totalorder %s136, 2
          %s138 = scalar_select %p137, %s136, 2
        $region24: #{tpu_custom_call.1} parent=19 // pred_fallthru
          _
      $region20: #{tpu_custom_call.1} parent=5 // pred_fallthru
        _
      %p139 = scmp.le.s32.totalorder 1, %s9
      %p140 = scmp.lt.s32.totalorder %s9, 4
      %p141 = pnand %p139, %p140
      %p142 = pneg %p141
      // Predicated region
      $region25: #{tpu_custom_call.1} parent=5 // pred_check
        _
      $region26: #{tpu_custom_call.1} parent=5 // pred_check_branch
        %144 = sbr.rel (%p141) target = $region28
      $region27: #{tpu_custom_call.1} parent=5 // pred_region
        %s145 = ssub.s32 %s9, 1
        %s146 = smul.u32 %s18, 3
        %s147 = sadd.s32 %s146, %s19
        %p148 = scmp.lt.s32.totalorder %s147, 2
        %s149 = scalar_select %p148, %s147, 2
        %p150 = scmp.lt.s32.totalorder %s149, 2
        %s151 = scalar_select %p150, %s149, 2
        %s152 = smul.addr %s151, 8
        %s153 = scalar_lea.vmem %s0, %s152
        %p154 = pneg %p55
        %p155 = pneg %p52
        %p156 = pneg %p76
        %p157 = pneg %p73
        %p158 = pneg %p102
        %p159 = pneg %p99
        %s160 = smul.u32 %s18, 3
        %s161 = sadd.s32 %s160, %s19
        %p162 = scmp.lt.s32.totalorder %s161, 2
        %s163 = scalar_select %p162, %s161, 2
        %p164 = scmp.lt.s32.totalorder %s163, 2
        %s165 = scalar_select %p164, %s163, 2
        %s166 = smul.addr %s165, 8
        %s167 = scalar_lea.vmem %s0, %s166
        %s168 = smul.u32 %s18, 3
        %s169 = sadd.s32 %s168, %s19
        %p170 = scmp.lt.s32.totalorder %s169, 2
        %s171 = scalar_select %p170, %s169, 2
        %p172 = scmp.eq.s32.totalorder %s19, 0
        // Predicated region
        $region29: #{tpu_custom_call.1} parent=27 // pred_check
          %p173 = pneg %p172
        $region30: #{tpu_custom_call.1} parent=27 // pred_check_branch
          %175 = sbr.rel (%p173) target = $region32
        $region31: #{tpu_custom_call.1} parent=27 // pred_region
          %vm176 = vcmask 7168
          %177 = vst.msk [vmem:[#allocation2] sm:$0xff] %vm176, 0.0
        $region32: #{tpu_custom_call.1} parent=27 // pred_fallthru
          _
        %s178 = smul.u32 %s18, 3
        %s179 = sadd.s32 %s178, %s19
        %p180 = scmp.lt.s32.totalorder %s179, 2
        %s181 = scalar_select %p180, %s179, 2
        %v182 = vld [vmem:[%s167] sm:$0xff]
        %s183 = smul.u32 %s181, 8
        %s184 = scalar_lea.vmem %s1, %s183
        %v185 = vld [vmem:[%s184] sm:$0xff]
        %186 = vmax.xlane.f32.xlu0 %v182
        %v187 = vpop.xlane.xlu0 %186
        %v188 = vsub.f32 %v182, %v187
        %v189 = vmul.f32 %v188, 1.442695
        %v190 = vpow.pop %v189
        %191 = vadd.xlane.f32.xlu0 %v190
        %v192 = vpop.xlane.xlu0 %191
        %v193 = vlog2.pop %v192
        %v194 = vmul.f32 %v193, 0.6931472
        %v195 = vadd.f32 %v187, %v194
        %v196 = vlaneseq
        %v197 = vand.u32 %v196, 127
        %198 = vset.pattern.permute.xlu0 0
        %199 = vperm.xlu0 %198, %v185
        %v200 = vpop.permute.xlu0 %199
        %vm201 = vcmp.eq.s32.totalorder %v197, %v200
        %v202 = vsel %vm201, %v182, 0.0
        %203 = vadd.xlane.f32.xlu0 %v202
        %v204 = vpop.xlane.xlu0 %203
        %v205 = vsub.f32 %v195, %v204
        %v206 = vlaneseq
        %v207 = vshrl.u32 %v206, 7
        %s208 = smul.u32 %s179, 8
        %v209 = vstv %s208
        %v210 = vadd.s32 %v209, %v207
        %vm211 = vcmp.lt.s32.totalorder %v210, 20
        %v212 = vsel %vm211, %v205, 0.0
        %v213 = vld [vmem:[#allocation2] sm:$0xff]
        %v214 = vadd.f32 %v213, %v212
        %vm215 = vcmask 7168
        %216 = vst.msk [vmem:[#allocation2] sm:$0xff] %vm215, %v214
        %p217 = scmp.eq.s32.totalorder %s19, 2
        // Predicated region
        $region33: #{tpu_custom_call.1} parent=27 // pred_check
          %p218 = pneg %p217
        $region34: #{tpu_custom_call.1} parent=27 // pred_check_branch
          %220 = sbr.rel (%p218) target = $region36
        $region35: #{tpu_custom_call.1} parent=27 // pred_region
          %v221 = vld [vmem:[#allocation2] sm:$0xff]
          %v222 = vsel %vm215, %v221, 0.0
          %223 = vadd.xlane.f32.xlu0 %v222
          %v224 = vpop.xlane.xlu0 %223
          %v225 = vrot.slane %v224, 4
          %v226 = vadd.f32 %v224, %v225
          %v227 = vrot.slane %v226, 2
          %v228 = vadd.f32 %v226, %v227
          %v229 = vrot.slane %v228, 1
          %v230 = vadd.f32 %v228, %v229
          %s231 = vtos %v230
          %v232 = vstv %s231
          %233 = vst [vmem:[#allocation3] sm:$0xff] %v232
        $region36: #{tpu_custom_call.1} parent=27 // pred_fallthru
          _
        // Predicated region
        $region37: #{tpu_custom_call.1} parent=27 // pred_check
          %p234 = pneg %p99
        $region38: #{tpu_custom_call.1} parent=27 // pred_check_branch
          %236 = sbr.rel (%p234) target = $region40
        $region39: #{tpu_custom_call.1} parent=27 // pred_region
          %s238 = ssub.s32 128, 128
          %239 = vsyncadd [#allocation4], %s238
          %s240 = smul.addr %s18, 128
          %s241 = scalar_lea.hbm %s2, %s240
          %s243 = sshll.u32 [#allocation3], 4
          %s244 = int_to_ptr.vmem [resolvable:$true] %s243
          %246 = dma.vmem_to_hbm [thread:$0]  %s244, 128, %s241, [#allocation4]
        $region40: #{tpu_custom_call.1} parent=27 // pred_fallthru
          _
        // Predicated region
        $region41: #{tpu_custom_call.1} parent=27 // pred_check
          %p247 = pneg %p99
        $region42: #{tpu_custom_call.1} parent=27 // pred_check_branch
          %249 = sbr.rel (%p247) target = $region44
        $region43: #{tpu_custom_call.1} parent=27 // pred_region
          %250 = dma.done [#allocation4], 128
        $region44: #{tpu_custom_call.1} parent=27 // pred_fallthru
          _
      $region28: #{tpu_custom_call.1} parent=5 // pred_fallthru
        _
      %p251 = scmp.le.s32.totalorder 2, %s9
      // Predicated region
      $region45: #{tpu_custom_call.1} parent=5 // pred_check
        %p252 = pneg %p251
      $region46: #{tpu_custom_call.1} parent=5 // pred_check_branch
        %254 = sbr.rel (%p252) target = $region48
      $region47: #{tpu_custom_call.1} parent=5 // pred_region
        %s255 = ssub.s32 %s9, 2
      $region48: #{tpu_custom_call.1} parent=5 // pred_fallthru
        _
    $region6: #{tpu_custom_call.1} parent=1 // loop_footer
      %s13 = sadd.s32 1, %s9
    $region7: #{tpu_custom_call.1} parent=1 // loop_footer_branch
      %8 = sbr.rel target = $region3
    $region8: #{tpu_custom_call.1} parent=1 // loop_exit
      _
    %256 = vsyncpa [#allocation4], 1
    %s257 = scalar_lea.sflag [#allocation4], 1
    %258 = vsyncpa %s257, 1

</llo_original>
